<compile_context>
chip_gen: v7x
topology: tpu7x:2x2x1
jax: 0.10.0
libtpu: 0.0.40
codegen_flags: <defaults>
</compile_context>

<pallas_src>
import functools

import jax
import jax.numpy as jnp
from jax.experimental import pallas as pl
from jax.experimental.pallas import tpu as pltpu

LANE = 128
_V7X_VMEM_BYTES = 64 * 1024 * 1024  # per-TensorCore VMEM on v7x (smallest gen)


def _mlp_kernel(n_rest, x_ref, w0_ref, w_ref, b_ref, o_ref):
    """Fused MLP row tile: chain of (bf16 MXU matmul, f32 bias + ReLU).

    x_ref : (TILE, K0)    bf16  row tile of the input (native feature width,
                                only rounded up to the 16-row bf16 sublane)
    w0_ref: (K0, F)       bf16  first-layer weight (constant index -> VMEM resident)
    w_ref : (Lr, F, F)    bf16  remaining layer weights (VMEM resident)
    b_ref : (Lr+1, 1, F)  f32   all layer biases (VMEM resident)
    o_ref : (TILE, F)     bf16  lane-dense output slab

    ReLU is applied after EVERY layer, including the last one, matching the
    PyTorch module's `output_activation`.
    """
    # Layer 0: native-width bf16 input straight into the MXU, f32 accumulate.
    h = jnp.dot(x_ref[...], w0_ref[...], preferred_element_type=jnp.float32)
    h = jnp.maximum(h + b_ref[0], 0.0)
    # Remaining layers (small static count -> unrolled).
    for l in range(n_rest):
        h = jnp.dot(h.astype(jnp.bfloat16), w_ref[l],
                    preferred_element_type=jnp.float32)
        h = jnp.maximum(h + b_ref[l + 1], 0.0)
    o_ref[...] = h.astype(o_ref.dtype)


def pack_mlp_params(weights, biases):
    """Pack weights/biases ONCE (hoisted out of the per-forward path).

    weights: list of [in_l, out_l] f32 (transposed vs. torch's [out, in])
    biases : list of [out_l] or [1, out_l] f32
    """
    n_layers = len(weights)
    assert n_layers >= 2, "the MLP module always has >= 2 Linear layers"
    dim_in = weights[0].shape[0]
    dim_out = weights[-1].shape[1]

    # Hidden / output feature dims padded to the 128-lane width.
    F = LANE * pl.cdiv(max(w.shape[1] for w in weights), LANE)
    # First-layer contracting dim only padded to the bf16 sublane pack (16),
    # so the input never gets 128-lane inflated in HBM.
    K0 = 16 * pl.cdiv(dim_in, 16)

    w0 = jnp.zeros((K0, F), jnp.bfloat16)
    w0 = w0.at[:dim_in, :weights[0].shape[1]].set(weights[0].astype(jnp.bfloat16))

    n_rest = n_layers - 1
    w_rest = jnp.zeros((n_rest, F, F), jnp.bfloat16)
    for l in range(n_rest):
        w = weights[l + 1]
        fi, fo = w.shape
        w_rest = w_rest.at[l, :fi, :fo].set(w.astype(jnp.bfloat16))

    b_packed = jnp.zeros((n_layers, 1, F), jnp.float32)
    for l, b in enumerate(biases):
        b = jnp.reshape(b, (-1,)).astype(jnp.float32)
        b_packed = b_packed.at[l, 0, :b.shape[0]].set(b)

    return dict(w0=w0, w_rest=w_rest, b=b_packed,
                dim_in=dim_in, dim_out=dim_out, K0=K0, F=F)


def _choose_row_tile(n_rows, tile_n):
    """Pick a row tile that is a bf16-friendly multiple of 16 (or the full,
    8-aligned array for tiny batches) and gives >= 2 grid steps whenever
    possible so v7x's two TensorCores both get work."""
    tile_n = 16 * pl.cdiv(max(int(tile_n), 16), 16)
    if n_rows <= 16:
        rows = 8 * pl.cdiv(n_rows, 8)            # single block == full array dims
    elif n_rows <= tile_n:
        rows = 16 * pl.cdiv(pl.cdiv(n_rows, 2), 16)   # split for megacore
    else:
        rows = tile_n
    return rows, rows * pl.cdiv(n_rows, rows)


def mlp_forward(x, params, *, tile_n=512, out_dtype=jnp.float32):
    """Run the fused MLP Pallas kernel on x: [N, dim_in]."""
    w0, w_rest, b = params["w0"], params["w_rest"], params["b"]
    dim_in, dim_out = params["dim_in"], params["dim_out"]
    K0, F = params["K0"], params["F"]
    n_rest = w_rest.shape[0]
    n_layers = n_rest + 1

    N = x.shape[0]
    tile_rows, n_pad = _choose_row_tile(N, tile_n)
    grid = (n_pad // tile_rows,)

    # bf16 input; rows padded to the grid, columns only to K0 (16-multiple).
    x_in = jnp.zeros((n_pad, K0), jnp.bfloat16).at[:N, :dim_in].set(
        x.astype(jnp.bfloat16))

    # Trace-time VMEM budget check against the smallest generation (v7x,
    # 64 MiB / TensorCore). Weights and activation/output blocks are
    # double-buffered by the pipeline.
    resident = 2 * (w0.size * 2 + w_rest.size * 2 + b.size * 4)
    streamed = 2 * (tile_rows * K0 * 2 + tile_rows * F * 2)
    assert resident + streamed < _V7X_VMEM_BYTES, (
        "MLP operands exceed the v7x 64 MiB VMEM budget; reduce tile_n or "
        "split layers across an 'arbitrary' grid axis.")

    kernel = functools.partial(_mlp_kernel, n_rest)
    out = pl.pallas_call(
        kernel,
        out_shape=jax.ShapeDtypeStruct((n_pad, F), jnp.bfloat16),
        grid=grid,
        in_specs=[
            # Activations: tiled over rows; last dim equals the full array dim.
            pl.BlockSpec((tile_rows, K0), lambda i: (i, 0)),
            # Weights / biases: constant block index -> stay VMEM-resident.
            pl.BlockSpec((K0, F), lambda i: (0, 0)),
            pl.BlockSpec((n_rest, F, F), lambda i: (0, 0, 0)),
            pl.BlockSpec((n_layers, 1, F), lambda i: (0, 0, 0)),
        ],
        out_specs=pl.BlockSpec((tile_rows, F), lambda i: (i, 0)),
        compiler_params=pltpu.CompilerParams(
            dimension_semantics=("parallel",)),
    )(x_in, w0, w_rest, b)

    # Slice away row padding and output-lane padding; cast back for callers.
    return out[:N, :dim_out].astype(out_dtype)


def init_mlp_params(key, dim_in, dim_out, n_neurons, n_hidden_layers):
    """Deterministic init mimicking nn.Linear's default
    (U(-1/sqrt(fan_in), 1/sqrt(fan_in)) for weight and bias)."""
    dims = [dim_in] + [n_neurons] * n_hidden_layers + [dim_out]
    weights, biases = [], []
    for l in range(len(dims) - 1):
        fan_in, fan_out = dims[l], dims[l + 1]
        key, kw, kb = jax.random.split(key, 3)
        bound = 1.0 / (fan_in ** 0.5)
        # Stored as [in, out] (transposed w.r.t. torch's [out, in]).
        w = jax.random.uniform(kw, (fan_in, fan_out), jnp.float32, -bound, bound)
        b = jax.random.uniform(kb, (1, fan_out), jnp.float32, -bound, bound)
        weights.append(w)
        biases.append(b)
    return weights, biases


def mlp_reference_f32(x, weights, biases):
    """Pure-JAX f32 reference of the PyTorch forward (ReLU after every layer)."""
    h = x.astype(jnp.float32)
    for w, b in zip(weights, biases):
        h = jnp.maximum(h @ w + jnp.reshape(b, (1, -1)), 0.0)
    return h


def mlp_reference_kernel_path(x, weights, biases):
    """Mirror of the kernel numerics: bf16 matmul inputs, f32 accumulate,
    f32 bias + ReLU, bf16 activation/output storage."""
    h = x.astype(jnp.bfloat16)
    for w, b in zip(weights, biases):
        h = jnp.dot(h, w.astype(jnp.bfloat16),
                    preferred_element_type=jnp.float32)
        h = jnp.maximum(h + jnp.reshape(b, (1, -1)).astype(jnp.float32), 0.0)
        h = h.astype(jnp.bfloat16)
    return h.astype(jnp.float32)


if __name__ == "__main__":
    # Shapes consistent with the module:
    #   MLP(dim_in=16, dim_out=8, n_neurons=32, n_hidden_layers=2,
    #       activation='relu')  -> 3 Linear layers, ReLU after each.
    dim_in, dim_out, n_neurons, n_hidden_layers = 16, 8, 32, 2
    batch = 64  # small, but enough rows to exercise the 2-step (megacore) grid

    key = jax.random.PRNGKey(0)
    key, kx = jax.random.split(key)
    x = jax.random.normal(kx, (batch, dim_in), jnp.float32)

    weights, biases = init_mlp_params(key, dim_in, dim_out, n_neurons,
                                      n_hidden_layers)
    packed = pack_mlp_params(weights, biases)   # packed ONCE, reused per call

    out = mlp_forward(x, packed)
    out = jax.block_until_ready(out)
    assert out.shape == (batch, dim_out), out.shape

    # Tight check against a reference following the same bf16/f32 path.
    ref_k = mlp_reference_kernel_path(x, weights, biases)
    assert jnp.allclose(out, ref_k, atol=2e-3, rtol=2e-3), \
        float(jnp.max(jnp.abs(out - ref_k)))

    # Loose check against the full-f32 PyTorch-equivalent math (bf16 rounding
    # of MXU inputs / stored activations is the only difference).
    ref_f32 = mlp_reference_f32(x, weights, biases)
    assert jnp.allclose(out, ref_f32, atol=5e-2, rtol=5e-2), \
        float(jnp.max(jnp.abs(out - ref_f32)))

    print("KERNEL_OK")
</pallas_src>

<mosaic_0001>
module attributes {stable_mosaic.version = 11 : i64} {
  func.func @_mlp_kernel(%arg0: i32, %arg1: memref<32x16xbf16, #tpu.memory_space<vmem>>, %arg2: memref<16x128xbf16, #tpu.memory_space<vmem>>, %arg3: memref<2x128x128xbf16, #tpu.memory_space<vmem>>, %arg4: memref<3x1x128xf32, #tpu.memory_space<vmem>>, %arg5: memref<32x128xbf16, #tpu.memory_space<vmem>>) attributes {dimension_semantics = [#tpu.dimension_semantics<parallel>], iteration_bounds = array<i64: 2>, scalar_prefetch = 0 : i64, scratch_operands = 0 : i64, tpu.core_type = #tpu.core_type<tc>, window_params = [{transform_indices = @transform_0, window_bounds = array<i64: 32, 16>}, {pipeline_mode = #tpu.pipeline_mode<synchronous>, transform_indices = @transform_1, window_bounds = array<i64: 16, 128>}, {pipeline_mode = #tpu.pipeline_mode<synchronous>, transform_indices = @transform_2, window_bounds = array<i64: 2, 128, 128>}, {pipeline_mode = #tpu.pipeline_mode<synchronous>, transform_indices = @transform_3, window_bounds = array<i64: 3, 1, 128>}, {transform_indices = @transform_4, window_bounds = array<i64: 32, 128>}]} {
    %c0 = arith.constant 0 : index
    %c0_0 = arith.constant 0 : index
    %0 = vector.load %arg1[%c0, %c0_0] : memref<32x16xbf16, #tpu.memory_space<vmem>>, vector<32x16xbf16>
    %c0_1 = arith.constant 0 : index
    %c0_2 = arith.constant 0 : index
    %1 = vector.load %arg2[%c0_1, %c0_2] : memref<16x128xbf16, #tpu.memory_space<vmem>>, vector<16x128xbf16>
    %cst = arith.constant dense<0.000000e+00> : vector<32x128xf32>
    %2 = tpu.matmul %0, %1, %cst {dimension_numbers = #tpu.dot_dimension_numbers<[1], [0], [0], [1], [0, 0, 1, 1], [], []>} : vector<32x16xbf16>, vector<16x128xbf16>, vector<32x128xf32> -> vector<32x128xf32>
    %c0_3 = arith.constant 0 : index
    %c0_4 = arith.constant 0 : index
    %c0_5 = arith.constant 0 : index
    %3 = vector.load %arg4[%c0_3, %c0_4, %c0_5] : memref<3x1x128xf32, #tpu.memory_space<vmem>>, vector<1x1x128xf32>
    %4 = vector.shape_cast %3 : vector<1x1x128xf32> to vector<1x128xf32>
    %5 = vector.broadcast %4 : vector<1x128xf32> to vector<32x128xf32>
    %6 = arith.addf %2, %5 : vector<32x128xf32>
    %cst_6 = arith.constant 0.000000e+00 : f32
    %7 = vector.broadcast %cst_6 : f32 to vector<32x128xf32>
    %8 = arith.maximumf %6, %7 : vector<32x128xf32>
    %9 = arith.truncf %8 : vector<32x128xf32> to vector<32x128xbf16>
    %c0_7 = arith.constant 0 : index
    %c0_8 = arith.constant 0 : index
    %c0_9 = arith.constant 0 : index
    %10 = vector.load %arg3[%c0_7, %c0_8, %c0_9] : memref<2x128x128xbf16, #tpu.memory_space<vmem>>, vector<1x128x128xbf16>
    %11 = vector.shape_cast %10 : vector<1x128x128xbf16> to vector<128x128xbf16>
    %cst_10 = arith.constant dense<0.000000e+00> : vector<32x128xf32>
    %12 = tpu.matmul %9, %11, %cst_10 {dimension_numbers = #tpu.dot_dimension_numbers<[1], [0], [0], [1], [0, 0, 1, 1], [], []>} : vector<32x128xbf16>, vector<128x128xbf16>, vector<32x128xf32> -> vector<32x128xf32>
    %c1 = arith.constant 1 : index
    %c0_11 = arith.constant 0 : index
    %c0_12 = arith.constant 0 : index
    %13 = vector.load %arg4[%c1, %c0_11, %c0_12] : memref<3x1x128xf32, #tpu.memory_space<vmem>>, vector<1x1x128xf32>
    %14 = vector.shape_cast %13 : vector<1x1x128xf32> to vector<1x128xf32>
    %15 = vector.broadcast %14 : vector<1x128xf32> to vector<32x128xf32>
    %16 = arith.addf %12, %15 : vector<32x128xf32>
    %cst_13 = arith.constant 0.000000e+00 : f32
    %17 = vector.broadcast %cst_13 : f32 to vector<32x128xf32>
    %18 = arith.maximumf %16, %17 : vector<32x128xf32>
    %19 = arith.truncf %18 : vector<32x128xf32> to vector<32x128xbf16>
    %c1_14 = arith.constant 1 : index
    %c0_15 = arith.constant 0 : index
    %c0_16 = arith.constant 0 : index
    %20 = vector.load %arg3[%c1_14, %c0_15, %c0_16] : memref<2x128x128xbf16, #tpu.memory_space<vmem>>, vector<1x128x128xbf16>
    %21 = vector.shape_cast %20 : vector<1x128x128xbf16> to vector<128x128xbf16>
    %cst_17 = arith.constant dense<0.000000e+00> : vector<32x128xf32>
    %22 = tpu.matmul %19, %21, %cst_17 {dimension_numbers = #tpu.dot_dimension_numbers<[1], [0], [0], [1], [0, 0, 1, 1], [], []>} : vector<32x128xbf16>, vector<128x128xbf16>, vector<32x128xf32> -> vector<32x128xf32>
    %c2 = arith.constant 2 : index
    %c0_18 = arith.constant 0 : index
    %c0_19 = arith.constant 0 : index
    %23 = vector.load %arg4[%c2, %c0_18, %c0_19] : memref<3x1x128xf32, #tpu.memory_space<vmem>>, vector<1x1x128xf32>
    %24 = vector.shape_cast %23 : vector<1x1x128xf32> to vector<1x128xf32>
    %25 = vector.broadcast %24 : vector<1x128xf32> to vector<32x128xf32>
    %26 = arith.addf %22, %25 : vector<32x128xf32>
    %cst_20 = arith.constant 0.000000e+00 : f32
    %27 = vector.broadcast %cst_20 : f32 to vector<32x128xf32>
    %28 = arith.maximumf %26, %27 : vector<32x128xf32>
    %29 = arith.truncf %28 : vector<32x128xf32> to vector<32x128xbf16>
    %c0_21 = arith.constant 0 : index
    %c0_22 = arith.constant 0 : index
    %30 = vector.load %arg5[%c0_21, %c0_22] : memref<32x128xbf16, #tpu.memory_space<vmem>>, vector<32x128xbf16>
    tpu.vector_store %arg5[%c0_21, %c0_22], %29 {strides = array<i32>} : memref<32x128xbf16, #tpu.memory_space<vmem>>, vector<32x128xbf16>,
    return
  }
  func.func @transform_0(%arg0: i32) -> (i32, i32) {
    %c0_i32 = arith.constant 0 : i32
    %c0_i32_0 = arith.constant 0 : i32
    return %arg0, %c0_i32 : i32, i32
  }
  func.func @transform_1(%arg0: i32) -> (i32, i32) {
    %c0_i32 = arith.constant 0 : i32
    %c0_i32_0 = arith.constant 0 : i32
    %c0_i32_1 = arith.constant 0 : i32
    return %c0_i32, %c0_i32_0 : i32, i32
  }
  func.func @transform_2(%arg0: i32) -> (i32, i32, i32) {
    %c0_i32 = arith.constant 0 : i32
    %c0_i32_0 = arith.constant 0 : i32
    %c0_i32_1 = arith.constant 0 : i32
    %c0_i32_2 = arith.constant 0 : i32
    return %c0_i32, %c0_i32_0, %c0_i32_1 : i32, i32, i32
  }
  func.func @transform_3(%arg0: i32) -> (i32, i32, i32) {
    %c0_i32 = arith.constant 0 : i32
    %c0_i32_0 = arith.constant 0 : i32
    %c0_i32_1 = arith.constant 0 : i32
    %c0_i32_2 = arith.constant 0 : i32
    return %c0_i32, %c0_i32_0, %c0_i32_1 : i32, i32, i32
  }
  func.func @transform_4(%arg0: i32) -> (i32, i32) {
    %c0_i32 = arith.constant 0 : i32
    %c0_i32_0 = arith.constant 0 : i32
    return %arg0, %c0_i32 : i32, i32
  }
}

</mosaic_0001>

<llo_original>
// kernel: tpu_custom_call.1
$region0: #{tpu_custom_call.1}
  #allocation0 [shape = 'u32[]', space=smem, size = 0x4, offset = 0x4, fixed_abs, tag = 'smem constant byte address 0x4 - core index']
  #allocation1 [shape = 'u32[144,128]{1,0:T(1,128)}', space=vmem, size = 0x12000, scoped, tag = 'internal scratch']
  %s0 = inlined_call_operand.vmem [shape: bf16[64,16], index: 0, kind: input, shape index: {}]
  %s1 = inlined_call_operand.vmem [shape: bf16[16,128], index: 1, kind: input, shape index: {}]
  %s2 = inlined_call_operand.hbm [shape: bf16[2,128,128], index: 2, kind: input, shape index: {}]
  %s3 = inlined_call_operand.vmem [shape: f32[3,1,128], index: 3, kind: input, shape index: {}]
  %s4 = inlined_call_operand.hbm [shape: bf16[64,128], index: 4, kind: output, shape index: {}]
  %s5 = sld [smem:[#allocation0]]
  $region53: #{tpu_custom_call.1} parent=0
    _
  %s7 = ssub.s32 1, %s5
  %s8 = scalar_select 0, %s7, %s5
  $region1: #{tpu_custom_call.1} parent=0
    #allocation2 [shape = 'u8[65536]{0}', space=vmem, size = 0x10000, scoped, tag = 'input window, operand 2, single buffered']
    #allocation3 [shape = 's32[2]{0}', space=sflag, size = 0x8, scoped, tag = 'scoped memory for tpu_custom_call.1']
    #allocation4 [shape = 's32[2]{0}', space=sflag, size = 0x8, scoped, tag = 'scoped memory for tpu_custom_call.1']
    #allocation5 [shape = 'u8[16384]{0}', space=vmem, size = 0x4000, scoped, tag = 'output window, operand 0']
    %9 = vsyncpa [#allocation3], 0
    %10 = vsyncpa [#allocation4], 0
    %s11 = scalar_lea.sflag [#allocation4], 1
    %12 = vsyncpa %s11, 0
    loop: start=0, step=1, limit=4
    $region2: #{tpu_custom_call.1} parent=1 // loop_pre_header
      _
    $region3: #{tpu_custom_call.1} parent=1 // loop_header
      %s14 = sphi 0, %s18
      %p15 = scmp.ge.s32.totalorder %s14, 4
      %s24 = sphi 0, %s26
      %s27 = sphi 0, %s24
      %s28 = sphi 0, %s27
      %s44 = sphi 0, %s28
      %s48 = sphi 0, %s48
      %s50 = sphi 0, %s48
      %s51 = sphi 0, %s50
      %s65 = sphi 0, %s51
      %s69 = sphi 0, %s69
      %s71 = sphi 0, %s69
      %s72 = sphi 0, %s71
      %s86 = sphi 0, %s72
      %s90 = sphi 0, %s90
      %s92 = sphi 0, %s90
      %s93 = sphi 0, %s92
      %s107 = sphi 0, %s93
      %s113 = sphi 0, %s115
      %s116 = sphi 0, %s113
      %s117 = sphi 0, %s116
      %s133 = sphi 0, %s117
    $region4: #{tpu_custom_call.1} parent=1 // loop_header_branch
      %17 = sbr.rel (%p15) target = $region8
    $region5: #{tpu_custom_call.1} parent=1 // loop_body
      %s19 = ssub.s32 %s14, 1
      %s20 = ssub.s32 %s14, 2
      %s21 = sadd.s32 %s14, 1
      %s22 = ssub.s32 %s14, %s21
      %p23 = scmp.eq.s32.totalorder %s22, 0
      %s25 = sadd.s32 %s24, 1
      %s26 = scalar_select %p23, %s24, %s25
      %p29 = pneg %p23
      %p30 = scmp.eq.s32.totalorder %s14, 1
      %p31 = por %p29, %p30
      %p32 = scmp.ne.s32.totalorder %s24, %s27
      %p33 = scmp.eq.s32.totalorder %s14, 0
      %p34 = por %p32, %p33
      %p35 = scmp.ne.s32.totalorder %s24, %s27
      %p36 = scmp.eq.s32.totalorder %s19, 1
      %p37 = por %p35, %p36
      %p38 = scmp.ne.s32.totalorder %s27, %s28
      %p39 = scmp.eq.s32.totalorder %s19, 0
      %p40 = por %p38, %p39
      %p41 = scmp.ne.s32.totalorder %s27, %s28
      %p42 = scmp.eq.s32.totalorder %s20, 1
      %p43 = por %p41, %p42
      %p45 = scmp.ne.s32.totalorder %s28, %s44
      %p46 = scmp.eq.s32.totalorder %s20, 0
      %p47 = por %p45, %p46
      %s49 = sadd.s32 %s48, 1
      %p52 = scmp.eq.s32.totalorder %s14, 1
      %p53 = scmp.ne.s32.totalorder %s48, %s50
      %p54 = scmp.eq.s32.totalorder %s14, 0
      %p55 = por %p53, %p54
      %p56 = scmp.ne.s32.totalorder %s48, %s50
      %p57 = scmp.eq.s32.totalorder %s19, 1
      %p58 = por %p56, %p57
      %p59 = scmp.ne.s32.totalorder %s50, %s51
      %p60 = scmp.eq.s32.totalorder %s19, 0
      %p61 = por %p59, %p60
      %p62 = scmp.ne.s32.totalorder %s50, %s51
      %p63 = scmp.eq.s32.totalorder %s20, 1
      %p64 = por %p62, %p63
      %p66 = scmp.ne.s32.totalorder %s51, %s65
      %p67 = scmp.eq.s32.totalorder %s20, 0
      %p68 = por %p66, %p67
      %s70 = sadd.s32 %s69, 1
      %p73 = scmp.eq.s32.totalorder %s14, 1
      %p74 = scmp.ne.s32.totalorder %s69, %s71
      %p75 = scmp.eq.s32.totalorder %s14, 0
      %p76 = por %p74, %p75
      %p77 = scmp.ne.s32.totalorder %s69, %s71
      %p78 = scmp.eq.s32.totalorder %s19, 1
      %p79 = por %p77, %p78
      %p80 = scmp.ne.s32.totalorder %s71, %s72
      %p81 = scmp.eq.s32.totalorder %s19, 0
      %p82 = por %p80, %p81
      %p83 = scmp.ne.s32.totalorder %s71, %s72
      %p84 = scmp.eq.s32.totalorder %s20, 1
      %p85 = por %p83, %p84
      %p87 = scmp.ne.s32.totalorder %s72, %s86
      %p88 = scmp.eq.s32.totalorder %s20, 0
      %p89 = por %p87, %p88
      %s91 = sadd.s32 %s90, 1
      %p94 = scmp.eq.s32.totalorder %s14, 1
      %p95 = scmp.ne.s32.totalorder %s90, %s92
      %p96 = scmp.eq.s32.totalorder %s14, 0
      %p97 = por %p95, %p96
      %p98 = scmp.ne.s32.totalorder %s90, %s92
      %p99 = scmp.eq.s32.totalorder %s19, 1
      %p100 = por %p98, %p99
      %p101 = scmp.ne.s32.totalorder %s92, %s93
      %p102 = scmp.eq.s32.totalorder %s19, 0
      %p103 = por %p101, %p102
      %p104 = scmp.ne.s32.totalorder %s92, %s93
      %p105 = scmp.eq.s32.totalorder %s20, 1
      %p106 = por %p104, %p105
      %p108 = scmp.ne.s32.totalorder %s93, %s107
      %p109 = scmp.eq.s32.totalorder %s20, 0
      %p110 = por %p108, %p109
      %s111 = ssub.s32 %s14, %s21
      %p112 = scmp.eq.s32.totalorder %s111, 0
      %s114 = sadd.s32 %s113, 1
      %s115 = scalar_select %p112, %s113, %s114
      %p118 = pneg %p112
      %p119 = scmp.eq.s32.totalorder %s14, 1
      %p120 = por %p118, %p119
      %p121 = scmp.ne.s32.totalorder %s113, %s116
      %p122 = scmp.eq.s32.totalorder %s14, 0
      %p123 = por %p121, %p122
      %p124 = scmp.ne.s32.totalorder %s113, %s116
      %p125 = scmp.eq.s32.totalorder %s19, 1
      %p126 = por %p124, %p125
      %p127 = scmp.ne.s32.totalorder %s116, %s117
      %p128 = scmp.eq.s32.totalorder %s19, 0
      %p129 = por %p127, %p128
      %p130 = scmp.ne.s32.totalorder %s116, %s117
      %p131 = scmp.eq.s32.totalorder %s20, 1
      %p132 = por %p130, %p131
      %p134 = scmp.ne.s32.totalorder %s117, %s133
      %p135 = scmp.eq.s32.totalorder %s20, 0
      %p136 = por %p134, %p135
      %p137 = scmp.le.s32.totalorder 1, %s14
      %p138 = scmp.lt.s32.totalorder %s14, 3
      %p139 = pnand %p137, %p138
      %p140 = pneg %p139
      // Predicated region
      $region9: #{tpu_custom_call.1} parent=5 // pred_check
        _
      $region10: #{tpu_custom_call.1} parent=5 // pred_check_branch
        %142 = sbr.rel (%p139) target = $region12
      $region11: #{tpu_custom_call.1} parent=5 // pred_region
        %s143 = ssub.s32 %s14, 1
        // Predicated region
        $region13: #{tpu_custom_call.1} parent=11 // pred_check
          %p144 = pneg %p61
        $region14: #{tpu_custom_call.1} parent=11 // pred_check_branch
          %146 = sbr.rel (%p144) target = $region16
        $region15: #{tpu_custom_call.1} parent=11 // pred_region
          _
        $region16: #{tpu_custom_call.1} parent=11 // pred_fallthru
          _
        // Predicated region
        $region17: #{tpu_custom_call.1} parent=11 // pred_check
          %p147 = pneg %p82
        $region18: #{tpu_custom_call.1} parent=11 // pred_check_branch
          %149 = sbr.rel (%p147) target = $region20
        $region19: #{tpu_custom_call.1} parent=11 // pred_region
          %s151 = ssub.s32 2048, 2048
          %152 = vsyncadd [#allocation3], %s151
          %s153 = sshll.u32 [#allocation2], 4
          %s154 = int_to_ptr.vmem [resolvable:$true] %s153
          %159 = dma.hbm_to_vmem [thread:$0]  %s2, 2048, %s154, [#allocation3], 64, 64, 4
        $region20: #{tpu_custom_call.1} parent=11 // pred_fallthru
          _
        // Predicated region
        $region21: #{tpu_custom_call.1} parent=11 // pred_check
          %p160 = pneg %p103
        $region22: #{tpu_custom_call.1} parent=11 // pred_check_branch
          %162 = sbr.rel (%p160) target = $region24
        $region23: #{tpu_custom_call.1} parent=11 // pred_region
          _
        $region24: #{tpu_custom_call.1} parent=11 // pred_fallthru
          _
      $region12: #{tpu_custom_call.1} parent=5 // pred_fallthru
        _
      %p163 = scmp.lt.s32.totalorder %s14, 2
      // Predicated region
      $region25: #{tpu_custom_call.1} parent=5 // pred_check
        %p164 = pneg %p163
      $region26: #{tpu_custom_call.1} parent=5 // pred_check_branch
        %166 = sbr.rel (%p164) target = $region28
      $region27: #{tpu_custom_call.1} parent=5 // pred_region
        // Predicated region
        $region29: #{tpu_custom_call.1} parent=27 // pred_check
          %p167 = pneg %p34
        $region30: #{tpu_custom_call.1} parent=27 // pred_check_branch
          %169 = sbr.rel (%p167) target = $region32
        $region31: #{tpu_custom_call.1} parent=27 // pred_region
          %s170 = smul.u32 4, %s14
          %p171 = scmp.lt.s32.totalorder %s170, 7
          %s172 = scalar_select %p171, %s170, 7
          %s173 = smul.addr %s172, 4
          %s174 = scalar_lea.vmem %s0, %s173
          %s175 = smul.u32 4, %s14
        $region32: #{tpu_custom_call.1} parent=27 // pred_fallthru
          _
      $region28: #{tpu_custom_call.1} parent=5 // pred_fallthru
        _
      %p176 = scmp.le.s32.totalorder 1, %s14
      %p177 = scmp.lt.s32.totalorder %s14, 3
      %p178 = pnand %p176, %p177
      %p179 = pneg %p178
      // Predicated region
      $region33: #{tpu_custom_call.1} parent=5 // pred_check
        _
      $region34: #{tpu_custom_call.1} parent=5 // pred_check_branch
        %181 = sbr.rel (%p178) target = $region36
      $region35: #{tpu_custom_call.1} parent=5 // pred_region
        %s182 = ssub.s32 %s14, 1
        // Predicated region
        $region37: #{tpu_custom_call.1} parent=35 // pred_check
          %p183 = pneg %p82
        $region38: #{tpu_custom_call.1} parent=35 // pred_check_branch
          %185 = sbr.rel (%p183) target = $region40
        $region39: #{tpu_custom_call.1} parent=35 // pred_region
          %186 = dma.done [#allocation3], 2048
        $region40: #{tpu_custom_call.1} parent=35 // pred_fallthru
          _
        %s187 = smul.u32 4, %s19
        %p188 = scmp.lt.s32.totalorder %s187, 7
        %s189 = scalar_select %p188, %s187, 7
        %s190 = smul.addr %s189, 4
        %s191 = scalar_lea.vmem %s0, %s190
        %p192 = pneg %p40
        %p193 = pneg %p37
        %p194 = pneg %p61
        %p195 = pneg %p58
        %p196 = pneg %p82
        %p197 = pneg %p79
        %p198 = pneg %p103
        %p199 = pneg %p100
        %p200 = pneg %p129
        %p201 = pneg %p126
        %s202 = sand.u32 %s116, 1
        %s203 = scalar_lea.sflag [#allocation4], %s202
        %s204 = sand.u32 %s116, 1
        %s205 = smul.addr %s204, 16
        %s206 = scalar_lea.vmem [#allocation5], %s205
        %s207 = smul.u32 4, %s19
        %p208 = scmp.lt.s32.totalorder %s207, 7
        %s209 = scalar_select %p208, %s207, 7
        %s210 = smul.addr %s209, 4
        %s211 = scalar_lea.vmem %s0, %s210
        %s212 = smul.u32 4, %s19
        %s213 = smul.u32 4, %s19
        %v215 = vld [vmem:[%s211] sm:$0xf]
        %v216 = vld [vmem:[%s211 + $0x4] sm:$0xf]
        %v217 = vld [vmem:[%s211 + $0x8] sm:$0xf]
        %v218 = vld [vmem:[%s211 + $0xc] sm:$0xf]
        %v219 = vld [vmem:[%s1] sm:$0xf]
        %v220 = vld [vmem:[%s1 + $0x4] sm:$0xf]
        %v221 = vld [vmem:[%s3] sm:$0x1]
        %v223 = vlaneseq
        %v224 = vshrl.u32 %v223, 7
        %v225 = vsub.s32 0, %v224
        %v226 = vrot.slane %v221, %v225
        %v232 = vunpack.c.l.b16 %v215
        %v233 = vunpack.c.l.b16 %v216
        %v234 = vunpack.c.l.b16 %v217
        %v235 = vunpack.c.l.b16 %v218
        %v236 = vpack.c.b16 %v233, %v232
        %v237 = vpack.c.b16 %v235, %v234
        %v240 = vunpack.c.l.b16 %v219
        %v241 = vunpack.c.l.b16 %v220
        %v242 = vpack.c.b16 %v241, %v240
        %vm244 = vcmask 130048
        %v246 = vsel %vm244, %v236, 0
        %v249 = vsel %vm244, %v237, 0
        %251 = vmatprep.subr.bf16.mxu0 0
        %252 = vmatpush1.bf16.msra.mxu0 %v242
        %253 = vmatprep.subr.bf16.mxu0 0
        %254 = vmatpush1.bf16.msra.mxu0 0
        %255 = vmatprep.subr.bf16.mxu0 0
        %256 = vmatpush1.bf16.msra.mxu0 0
        %257 = vmatprep.subr.bf16.mxu0 0
        %258 = vmatpush1.bf16.msra.mxu0 0
        %259 = vmatprep.subr.bf16.mxu0 0
        %260 = vmatpush1.bf16.msra.mxu0 0
        %261 = vmatprep.subr.bf16.mxu0 0
        %262 = vmatpush1.bf16.msra.mxu0 0
        %263 = vmatprep.subr.bf16.mxu0 0
        %264 = vmatpush1.bf16.msra.mxu0 0
        %265 = vmatprep.subr.bf16.mxu0 0
        %266 = vmatpush1.bf16.msra.mxu0 0
        %267 = vmatprep.subr.bf16.mxu0 0
        %268 = vmatpush1.bf16.msra.mxu0 0
        %269 = vmatprep.subr.bf16.mxu0 0
        %270 = vmatpush1.bf16.msra.mxu0 0
        %271 = vmatprep.subr.bf16.mxu0 0
        %272 = vmatpush1.bf16.msra.mxu0 0
        %273 = vmatprep.subr.bf16.mxu0 0
        %274 = vmatpush1.bf16.msra.mxu0 0
        %275 = vmatprep.subr.bf16.mxu0 0
        %276 = vmatpush1.bf16.msra.mxu0 0
        %277 = vmatprep.subr.bf16.mxu0 0
        %278 = vmatpush1.bf16.msra.mxu0 0
        %279 = vmatprep.subr.bf16.mxu0 0
        %280 = vmatpush1.bf16.msra.mxu0 0
        %281 = vmatprep.subr.bf16.mxu0 0
        %282 = vmatpush1.bf16.msra.mxu0 0
        %283 = vmatprep.mubr.bf16.mxu0 0
        %284 = vmatmul.mubr.bf16.gmra.mrb[0].mxu0 %v246
        %v285 = vpop.f32.mrb[0].mxu0
        %v286 = vadd.f32 %v226, %v285
        %v287 = vpop.f32.mrb[0].mxu0
        %v288 = vpop.f32.mrb[0].mxu0
        %v289 = vadd.f32 %v226, %v288
        %v290 = vpop.f32.mrb[0].mxu0
        %291 = vmatprep.mubr.bf16.mxu0 0
        %292 = vmatmul.mubr.bf16.gmra.mrb[0].mxu0 %v249
        %v293 = vpop.f32.mrb[0].mxu0
        %v294 = vadd.f32 %v226, %v293
        %v295 = vpop.f32.mrb[0].mxu0
        %v296 = vpop.f32.mrb[0].mxu0
        %v297 = vadd.f32 %v226, %v296
        %v298 = vpop.f32.mrb[0].mxu0
        %299 = vdwg.mxu0
        %v300 = vmax.f32 %v286, 0.0
        %v301 = vmax.f32 %v289, 0.0
        %v302 = vmax.f32 %v294, 0.0
        %v303 = vmax.f32 %v297, 0.0
        %v304 = vpack.c.bf16 %v301, %v300
        %v305 = vpack.c.bf16 %v303, %v302
        %v306 = vld [vmem:[#allocation2] sm:$0xf]
        %v307 = vld [vmem:[#allocation2 + $0x4] sm:$0xf]
        %v308 = vld [vmem:[#allocation2 + $0x8] sm:$0xf]
        %v309 = vld [vmem:[#allocation2 + $0xc] sm:$0xf]
        %v310 = vld [vmem:[#allocation2 + $0x10] sm:$0xf]
        %v311 = vld [vmem:[#allocation2 + $0x14] sm:$0xf]
        %v312 = vld [vmem:[#allocation2 + $0x18] sm:$0xf]
        %v313 = vld [vmem:[#allocation2 + $0x1c] sm:$0xf]
        %v314 = vld [vmem:[#allocation2 + $0x20] sm:$0xf]
        %v315 = vld [vmem:[#allocation2 + $0x24] sm:$0xf]
        %v316 = vld [vmem:[#allocation2 + $0x28] sm:$0xf]
        %v317 = vld [vmem:[#allocation2 + $0x2c] sm:$0xf]
        %v318 = vld [vmem:[#allocation2 + $0x30] sm:$0xf]
        %v319 = vld [vmem:[#allocation2 + $0x34] sm:$0xf]
        %v320 = vld [vmem:[#allocation2 + $0x38] sm:$0xf]
        %v321 = vld [vmem:[#allocation2 + $0x3c] sm:$0xf]
        %s322 = scalar_lea.vmem %s3, 1
        %v323 = vld [vmem:[%s322] sm:$0x1]
        %v325 = vlaneseq
        %v326 = vshrl.u32 %v325, 7
        %v327 = vsub.s32 0, %v326
        %v328 = vrot.slane %v323, %v327
        %v346 = vunpack.c.l.b16 %v306
        %v347 = vunpack.c.l.b16 %v307
        %v348 = vunpack.c.l.b16 %v308
        %v349 = vunpack.c.l.b16 %v309
        %v350 = vunpack.c.l.b16 %v310
        %v351 = vunpack.c.l.b16 %v311
        %v352 = vunpack.c.l.b16 %v312
        %v353 = vunpack.c.l.b16 %v313
        %v354 = vunpack.c.l.b16 %v314
        %v355 = vunpack.c.l.b16 %v315
        %v356 = vunpack.c.l.b16 %v316
        %v357 = vunpack.c.l.b16 %v317
        %v358 = vunpack.c.l.b16 %v318
        %v359 = vunpack.c.l.b16 %v319
        %v360 = vunpack.c.l.b16 %v320
        %v361 = vunpack.c.l.b16 %v321
        %v362 = vpack.c.b16 %v347, %v346
        %v363 = vpack.c.b16 %v349, %v348
        %v364 = vpack.c.b16 %v351, %v350
        %v365 = vpack.c.b16 %v353, %v352
        %v366 = vpack.c.b16 %v355, %v354
        %v367 = vpack.c.b16 %v357, %v356
        %v368 = vpack.c.b16 %v359, %v358
        %v369 = vpack.c.b16 %v361, %v360
        %378 = vmatprep.subr.bf16.mxu0 0
        %379 = vmatpush1.bf16.msra.mxu0 %v362
        %380 = vmatprep.subr.bf16.mxu0 0
        %381 = vmatpush1.bf16.msra.mxu0 %v363
        %382 = vmatprep.subr.bf16.mxu0 0
        %383 = vmatpush1.bf16.msra.mxu0 %v364
        %384 = vmatprep.subr.bf16.mxu0 0
        %385 = vmatpush1.bf16.msra.mxu0 %v365
        %386 = vmatprep.subr.bf16.mxu0 0
        %387 = vmatpush1.bf16.msra.mxu0 %v366
        %388 = vmatprep.subr.bf16.mxu0 0
        %389 = vmatpush1.bf16.msra.mxu0 %v367
        %390 = vmatprep.subr.bf16.mxu0 0
        %391 = vmatpush1.bf16.msra.mxu0 %v368
        %392 = vmatprep.subr.bf16.mxu0 0
        %393 = vmatpush1.bf16.msra.mxu0 %v369
        %394 = vmatprep.subr.bf16.mxu0 0
        %395 = vmatpush1.bf16.msra.mxu0 0
        %396 = vmatprep.subr.bf16.mxu0 0
        %397 = vmatpush1.bf16.msra.mxu0 0
        %398 = vmatprep.subr.bf16.mxu0 0
        %399 = vmatpush1.bf16.msra.mxu0 0
        %400 = vmatprep.subr.bf16.mxu0 0
        %401 = vmatpush1.bf16.msra.mxu0 0
        %402 = vmatprep.subr.bf16.mxu0 0
        %403 = vmatpush1.bf16.msra.mxu0 0
        %404 = vmatprep.subr.bf16.mxu0 0
        %405 = vmatpush1.bf16.msra.mxu0 0
        %406 = vmatprep.subr.bf16.mxu0 0
        %407 = vmatpush1.bf16.msra.mxu0 0
        %408 = vmatprep.subr.bf16.mxu0 0
        %409 = vmatpush1.bf16.msra.mxu0 0
        %410 = vmatprep.mubr.bf16.mxu0 0
        %411 = vmatmul.mubr.bf16.gmra.mrb[0].mxu0 %v304
        %v412 = vpop.f32.mrb[0].mxu0
        %v413 = vadd.f32 %v328, %v412
        %v414 = vpop.f32.mrb[0].mxu0
        %v415 = vpop.f32.mrb[0].mxu0
        %v416 = vadd.f32 %v328, %v415
        %v417 = vpop.f32.mrb[0].mxu0
        %418 = vmatprep.mubr.bf16.mxu0 0
        %419 = vmatmul.mubr.bf16.gmra.mrb[0].mxu0 %v305
        %v420 = vpop.f32.mrb[0].mxu0
        %v421 = vadd.f32 %v328, %v420
        %v422 = vpop.f32.mrb[0].mxu0
        %v423 = vpop.f32.mrb[0].mxu0
        %v424 = vadd.f32 %v328, %v423
        %v425 = vpop.f32.mrb[0].mxu0
        %426 = vdwg.mxu0
        %v427 = vmax.f32 %v413, 0.0
        %v428 = vmax.f32 %v416, 0.0
        %v429 = vmax.f32 %v421, 0.0
        %v430 = vmax.f32 %v424, 0.0
        %v431 = vpack.c.bf16 %v428, %v427
        %v432 = vpack.c.bf16 %v430, %v429
        %s433 = scalar_lea.vmem [#allocation2], 64
        %v434 = vld [vmem:[%s433] sm:$0xf]
        %v435 = vld [vmem:[%s433 + $0x4] sm:$0xf]
        %v436 = vld [vmem:[%s433 + $0x8] sm:$0xf]
        %v437 = vld [vmem:[%s433 + $0xc] sm:$0xf]
        %v438 = vld [vmem:[%s433 + $0x10] sm:$0xf]
        %v439 = vld [vmem:[%s433 + $0x14] sm:$0xf]
        %v440 = vld [vmem:[%s433 + $0x18] sm:$0xf]
        %v441 = vld [vmem:[%s433 + $0x1c] sm:$0xf]
        %v442 = vld [vmem:[%s433 + $0x20] sm:$0xf]
        %v443 = vld [vmem:[%s433 + $0x24] sm:$0xf]
        %v444 = vld [vmem:[%s433 + $0x28] sm:$0xf]
        %v445 = vld [vmem:[%s433 + $0x2c] sm:$0xf]
        %v446 = vld [vmem:[%s433 + $0x30] sm:$0xf]
        %v447 = vld [vmem:[%s433 + $0x34] sm:$0xf]
        %v448 = vld [vmem:[%s433 + $0x38] sm:$0xf]
        %v449 = vld [vmem:[%s433 + $0x3c] sm:$0xf]
        %s450 = scalar_lea.vmem %s3, 2
        %v451 = vld [vmem:[%s450] sm:$0x1]
        %v453 = vlaneseq
        %v454 = vshrl.u32 %v453, 7
        %v455 = vsub.s32 0, %v454
        %v456 = vrot.slane %v451, %v455
        %v474 = vunpack.c.l.b16 %v434
        %v475 = vunpack.c.l.b16 %v435
        %v476 = vunpack.c.l.b16 %v436
        %v477 = vunpack.c.l.b16 %v437
        %v478 = vunpack.c.l.b16 %v438
        %v479 = vunpack.c.l.b16 %v439
        %v480 = vunpack.c.l.b16 %v440
        %v481 = vunpack.c.l.b16 %v441
        %v482 = vunpack.c.l.b16 %v442
        %v483 = vunpack.c.l.b16 %v443
        %v484 = vunpack.c.l.b16 %v444
        %v485 = vunpack.c.l.b16 %v445
        %v486 = vunpack.c.l.b16 %v446
        %v487 = vunpack.c.l.b16 %v447
        %v488 = vunpack.c.l.b16 %v448
        %v489 = vunpack.c.l.b16 %v449
        %v490 = vpack.c.b16 %v475, %v474
        %v491 = vpack.c.b16 %v477, %v476
        %v492 = vpack.c.b16 %v479, %v478
        %v493 = vpack.c.b16 %v481, %v480
        %v494 = vpack.c.b16 %v483, %v482
        %v495 = vpack.c.b16 %v485, %v484
        %v496 = vpack.c.b16 %v487, %v486
        %v497 = vpack.c.b16 %v489, %v488
        %506 = vmatprep.subr.bf16.mxu0 0
        %507 = vmatpush1.bf16.msra.mxu0 %v490
        %508 = vmatprep.subr.bf16.mxu0 0
        %509 = vmatpush1.bf16.msra.mxu0 %v491
        %510 = vmatprep.subr.bf16.mxu0 0
        %511 = vmatpush1.bf16.msra.mxu0 %v492
        %512 = vmatprep.subr.bf16.mxu0 0
        %513 = vmatpush1.bf16.msra.mxu0 %v493
        %514 = vmatprep.subr.bf16.mxu0 0
        %515 = vmatpush1.bf16.msra.mxu0 %v494
        %516 = vmatprep.subr.bf16.mxu0 0
        %517 = vmatpush1.bf16.msra.mxu0 %v495
        %518 = vmatprep.subr.bf16.mxu0 0
        %519 = vmatpush1.bf16.msra.mxu0 %v496
        %520 = vmatprep.subr.bf16.mxu0 0
        %521 = vmatpush1.bf16.msra.mxu0 %v497
        %522 = vmatprep.subr.bf16.mxu0 0
        %523 = vmatpush1.bf16.msra.mxu0 0
        %524 = vmatprep.subr.bf16.mxu0 0
        %525 = vmatpush1.bf16.msra.mxu0 0
        %526 = vmatprep.subr.bf16.mxu0 0
        %527 = vmatpush1.bf16.msra.mxu0 0
        %528 = vmatprep.subr.bf16.mxu0 0
        %529 = vmatpush1.bf16.msra.mxu0 0
        %530 = vmatprep.subr.bf16.mxu0 0
        %531 = vmatpush1.bf16.msra.mxu0 0
        %532 = vmatprep.subr.bf16.mxu0 0
        %533 = vmatpush1.bf16.msra.mxu0 0
        %534 = vmatprep.subr.bf16.mxu0 0
        %535 = vmatpush1.bf16.msra.mxu0 0
        %536 = vmatprep.subr.bf16.mxu0 0
        %537 = vmatpush1.bf16.msra.mxu0 0
        %538 = vmatprep.mubr.bf16.mxu0 0
        %539 = vmatmul.mubr.bf16.gmra.mrb[0].mxu0 %v431
        %v540 = vpop.f32.mrb[0].mxu0
        %v541 = vadd.f32 %v456, %v540
        %v542 = vpop.f32.mrb[0].mxu0
        %v543 = vpop.f32.mrb[0].mxu0
        %v544 = vadd.f32 %v456, %v543
        %v545 = vpop.f32.mrb[0].mxu0
        %546 = vmatprep.mubr.bf16.mxu0 0
        %547 = vmatmul.mubr.bf16.gmra.mrb[0].mxu0 %v432
        %v548 = vpop.f32.mrb[0].mxu0
        %v549 = vadd.f32 %v456, %v548
        %v550 = vpop.f32.mrb[0].mxu0
        %v551 = vpop.f32.mrb[0].mxu0
        %v552 = vadd.f32 %v456, %v551
        %v553 = vpop.f32.mrb[0].mxu0
        %554 = vdwg.mxu0
        %v555 = vmax.f32 %v541, 0.0
        %v556 = vmax.f32 %v544, 0.0
        %v557 = vmax.f32 %v549, 0.0
        %v558 = vmax.f32 %v552, 0.0
        %v559 = vpack.c.bf16 %v556, %v555
        %v560 = vpack.c.bf16 %v558, %v557
        %v563 = vunpack.c.l.b16 %v559
        %v564 = vunpack.c.h.b16 %v559
        %v565 = vunpack.c.l.b16 %v560
        %v566 = vunpack.c.h.b16 %v560
        %v567 = vpack.c.b16 %v563, %v563
        %v568 = vpack.c.b16 %v564, %v564
        %v569 = vpack.c.b16 %v565, %v565
        %v570 = vpack.c.b16 %v566, %v566
        %575 = vst [vmem:[%s206] sm:$0xf] %v567
        %576 = vst [vmem:[%s206 + $0x4] sm:$0xf] %v568
        %577 = vst [vmem:[%s206 + $0x8] sm:$0xf] %v569
        %578 = vst [vmem:[%s206 + $0xc] sm:$0xf] %v570
        %s579 = sand.u32 %s116, 1
        %s580 = scalar_lea.sflag [#allocation4], %s579
        %s581 = sand.u32 %s116, 1
        %s582 = smul.addr %s581, 16
        %s583 = scalar_lea.vmem [#allocation5], %s582
        // Predicated region
        $region41: #{tpu_custom_call.1} parent=35 // pred_check
          %p584 = pneg %p126
        $region42: #{tpu_custom_call.1} parent=35 // pred_check_branch
          %586 = sbr.rel (%p584) target = $region44
        $region43: #{tpu_custom_call.1} parent=35 // pred_region
          %s587 = smul.u32 4, %s19
          %s589 = ssub.s32 256, 256
          %590 = vsyncadd %s580, %s589
          %s591 = smul.addr %s587, 64
          %s592 = scalar_lea.hbm %s4, %s591
          %s593 = sshll.u32 %s583, 4
          %s594 = int_to_ptr.vmem [resolvable:$true] %s593
          %599 = dma.vmem_to_hbm [thread:$0]  %s594, 256, %s592, %s580, 64, 64, 4
        $region44: #{tpu_custom_call.1} parent=35 // pred_fallthru
          _
      $region36: #{tpu_custom_call.1} parent=5 // pred_fallthru
        _
      %p600 = scmp.le.s32.totalorder 2, %s14
      // Predicated region
      $region45: #{tpu_custom_call.1} parent=5 // pred_check
        %p601 = pneg %p600
      $region46: #{tpu_custom_call.1} parent=5 // pred_check_branch
        %603 = sbr.rel (%p601) target = $region48
      $region47: #{tpu_custom_call.1} parent=5 // pred_region
        %s604 = ssub.s32 %s14, 2
        // Predicated region
        $region49: #{tpu_custom_call.1} parent=47 // pred_check
          %p605 = pneg %p132
        $region50: #{tpu_custom_call.1} parent=47 // pred_check_branch
          %607 = sbr.rel (%p605) target = $region52
        $region51: #{tpu_custom_call.1} parent=47 // pred_region
          %s608 = sand.u32 %s117, 1
          %s609 = scalar_lea.sflag [#allocation4], %s608
          %s610 = sand.u32 %s117, 1
          %s611 = smul.addr %s610, 16
          %s612 = scalar_lea.vmem [#allocation5], %s611
          %613 = dma.done %s609, 256
        $region52: #{tpu_custom_call.1} parent=47 // pred_fallthru
          _
      $region48: #{tpu_custom_call.1} parent=5 // pred_fallthru
        _
    $region6: #{tpu_custom_call.1} parent=1 // loop_footer
      %s18 = sadd.s32 1, %s14
    $region7: #{tpu_custom_call.1} parent=1 // loop_footer_branch
      %13 = sbr.rel target = $region3
    $region8: #{tpu_custom_call.1} parent=1 // loop_exit
      _
    %614 = vsyncpa [#allocation3], 1
    %s615 = scalar_lea.sflag [#allocation3], 1
    %616 = vsyncpa %s615, 1
    %617 = vsyncpa [#allocation4], 1
    %s618 = scalar_lea.sflag [#allocation4], 1
    %619 = vsyncpa %s618, 1

</llo_original>
